<compile_context>
chip_gen: v5e
topology: v5e:2x2
jax: 0.10.0
libtpu: 0.0.40
codegen_flags: <defaults>
</compile_context>

<pallas_src>
import functools
import math

import jax
import jax.numpy as jnp
from jax.experimental import pallas as pl
from jax.experimental.pallas import tpu as pltpu

MIN_SCALE = 0.05

_TARGET_BLOCK_BYTES = 2 * 1024 * 1024   # big enough to amortize ~0.35us/step
_MIN_BLOCK_BYTES = 512 * 1024           # don't shrink below the v6e roofline knee


def _round_up(a, b):
    return -(-a // b) * b


def _choose_tiling(n_slots, lane_width, itemsize):
    """Pick (slots_per_block, grid) for a (slots, lane_width) slab.

    Targets ~2 MiB per x block so double-buffered in+out (~8 MiB) fits every
    generation's scoped-VMEM default (incl. v7x's smaller 64 MiB physical /
    32 MiB scoped VMEM) while amortizing per-step pipeline overhead.  Keeps the
    grid >= ~4 steps when there is enough work so both v7x TensorCores are fed,
    but never shrinks blocks below ~512 KiB.
    """
    bytes_per_slot = lane_width * itemsize
    n_pad8 = _round_up(max(n_slots, 1), 8)
    tn = max(8, (_TARGET_BLOCK_BYTES // bytes_per_slot) // 8 * 8)
    tn = min(tn, n_pad8)
    while (tn > 8 and pl.cdiv(n_pad8, tn) < 4
           and (tn // 2) * bytes_per_slot >= _MIN_BLOCK_BYTES):
        tn = max(8, (tn // 2) // 8 * 8)
    grid = pl.cdiv(n_pad8, tn)
    tn = _round_up(pl.cdiv(n_pad8, grid), 8)   # rebalance to minimize tail pad
    return tn, grid


def _affine_coeffs(t, dim, max_scale, max_shift, inverse):
    """Fold sigmoid(scale/shift) + rotation into a per-slot affine map y = A x + b.

    t: (TN, 2*dim+1) raw transform channels (float32).
    Returns the nonzero A entries and b as (TN, 1) columns (cheap: computed
    once per TN slots, broadcast over all lanes afterwards).
    """
    sg = jax.nn.sigmoid(t[:, :2 * dim])
    scale = sg[:, :dim] * (max_scale - MIN_SCALE) + MIN_SCALE      # (TN, dim)
    shift = (sg[:, dim:2 * dim] - 0.5) * (2.0 * max_shift)         # (TN, dim)
    ang = t[:, 2 * dim:2 * dim + 1] * (2.0 * math.pi)              # (TN, 1)
    cosv = jnp.cos(ang)
    sinv = jnp.sin(ang)
    s = [scale[:, j:j + 1] for j in range(dim)]
    sh = [shift[:, j:j + 1] for j in range(dim)]

    if inverse:
        # y = R_inv (x - shift) / scale ; exact per-slot reciprocals so the
        # lane-wide data only ever sees broadcast multiplies.
        inv = [1.0 / sj for sj in s]
        a00, a01 = cosv * inv[0], sinv * inv[0]
        a10, a11 = -sinv * inv[1], cosv * inv[1]
        b0 = -(a00 * sh[0] + a01 * sh[1])
        b1 = -(a10 * sh[0] + a11 * sh[1])
        a22 = inv[2] if dim == 3 else None
        b2 = (-inv[2] * sh[2]) if dim == 3 else None
    else:
        # y = R (x * scale) + shift
        a00, a01 = cosv * s[0], -sinv * s[1]
        a10, a11 = sinv * s[0], cosv * s[1]
        b0, b1 = sh[0], sh[1]
        a22 = s[2] if dim == 3 else None
        b2 = sh[2] if dim == 3 else None
    return (a00, a01, a10, a11, a22), (b0, b1, b2)


# ----------------------------------------------------------------------------
# Fast path: fused kernel on the flat (slots, P*dim) view (no HBM transposes).
# ----------------------------------------------------------------------------
def _interleaved_kernel(x_ref, t_ref, o_ref, *, dim, max_scale, max_shift,
                        inverse, shift_prev, shift_next):
    # x_ref block: (TN, dim*P) -- slots on sublanes, per-point interleaved
    #              coords on lanes: [x0 y0 z0 x1 y1 z1 ...]
    # t_ref block: (TN, 2*dim+1) raw transform channels per slot.
    slab = x_ref[...].astype(jnp.float32)                      # (TN, L)
    (a00, a01, a10, a11, a22), (b0, b1, b2) = _affine_coeffs(
        t_ref[...].astype(jnp.float32), dim, max_scale, max_shift, inverse)

    # Neighbouring coordinates of the same point sit in adjacent lanes; fetch
    # them with lane rotations (XLU slot -- overlaps with the VPU work).
    r_prev = pltpu.roll(slab, shift_prev, axis=-1)             # r_prev[k] == slab[k-1]
    r_next = pltpu.roll(slab, shift_next, axis=-1)             # r_next[k] == slab[k+1]

    lane = jax.lax.broadcasted_iota(jnp.int32, (1, slab.shape[-1]), 1)
    cmod = lane % dim
    y0 = a00 * slab + a01 * r_next + b0                        # lanes k % dim == 0
    y1 = a10 * r_prev + a11 * slab + b1                        # lanes k % dim == 1
    if dim == 3:
        y2 = a22 * slab + b2                                   # lanes k % dim == 2
        y = jnp.where(cmod == 0, y0, jnp.where(cmod == 1, y1, y2))
    else:
        y = jnp.where(cmod == 0, y0, y1)
    o_ref[...] = y.astype(o_ref.dtype)


def _run_interleaved(x_flat, t, dim, max_scale, max_shift, inverse, tn, grid,
                     shifts):
    n_pad, lane_w = x_flat.shape
    tsize = 2 * dim + 1
    kernel = functools.partial(
        _interleaved_kernel, dim=dim, max_scale=max_scale, max_shift=max_shift,
        inverse=inverse, shift_prev=shifts[0], shift_next=shifts[1])
    return pl.pallas_call(
        kernel,
        grid=(grid,),
        in_specs=[
            pl.BlockSpec((tn, lane_w), lambda i: (i, 0)),
            pl.BlockSpec((tn, tsize), lambda i: (i, 0)),
        ],
        out_specs=pl.BlockSpec((tn, lane_w), lambda i: (i, 0)),
        out_shape=jax.ShapeDtypeStruct((n_pad, lane_w), x_flat.dtype),
        compiler_params=pltpu.CompilerParams(
            dimension_semantics=("parallel",)),
    )(x_flat, t)


# ----------------------------------------------------------------------------
# Fallback: coordinate-major planes (needs wrapper transposes); only used if
# lane rolls are unavailable on the running backend.
# ----------------------------------------------------------------------------
def _planes_kernel(x_ref, t_ref, o_ref, *, dim, max_scale, max_shift, inverse):
    # x_ref block: (dim, TN, P) -- per-coordinate (TN, P) planes, slot-dense.
    (a00, a01, a10, a11, a22), (b0, b1, b2) = _affine_coeffs(
        t_ref[...].astype(jnp.float32), dim, max_scale, max_shift, inverse)
    x0 = x_ref[0].astype(jnp.float32)
    x1 = x_ref[1].astype(jnp.float32)
    o_ref[0] = (a00 * x0 + a01 * x1 + b0).astype(o_ref.dtype)
    o_ref[1] = (a10 * x0 + a11 * x1 + b1).astype(o_ref.dtype)
    if dim == 3:
        x2 = x_ref[2].astype(jnp.float32)
        o_ref[2] = (a22 * x2 + b2).astype(o_ref.dtype)


def _run_planes(x_planes, t, dim, max_scale, max_shift, inverse, tn, grid):
    d, n_pad, p = x_planes.shape
    tsize = 2 * dim + 1
    kernel = functools.partial(_planes_kernel, dim=dim, max_scale=max_scale,
                               max_shift=max_shift, inverse=inverse)
    return pl.pallas_call(
        kernel,
        grid=(grid,),
        in_specs=[
            pl.BlockSpec((d, tn, p), lambda i: (0, i, 0)),
            pl.BlockSpec((tn, tsize), lambda i: (i, 0)),
        ],
        out_specs=pl.BlockSpec((d, tn, p), lambda i: (0, i, 0)),
        out_shape=jax.ShapeDtypeStruct((d, n_pad, p), x_planes.dtype),
        compiler_params=pltpu.CompilerParams(
            dimension_semantics=("parallel",)),
    )(x_planes, t)


@functools.lru_cache(maxsize=1)
def _roll_convention():
    """One-time micro self-test of the fused kernel on the running backend.

    Returns True/False for the lane-roll direction convention (prev-neighbour
    fetched with shift=+1 vs shift=L-1), or None if the fused path is
    unavailable (then the planar fallback is used).  Cached per process.
    """
    dim, n, p = 3, 8, 128
    lane_w = dim * p
    kx, kt = jax.random.split(jax.random.PRNGKey(1234))
    x = jax.random.normal(kx, (n, p, dim), jnp.float32)
    t = jax.random.normal(kt, (n, 2 * dim + 1), jnp.float32)
    want, _ = _reference_forward(x[None], t[None], dim=dim, inverse=True)
    for conv in (True, False):
        shifts = (1, lane_w - 1) if conv else (lane_w - 1, 1)
        try:
            got = _run_interleaved(x.reshape(n, lane_w), t, dim, 4.0, 5.0,
                                   True, tn=8, grid=1, shifts=shifts)
        except Exception:
            return None
        if bool(jnp.allclose(got.reshape(n, p, dim), want[0],
                             rtol=1e-4, atol=1e-4)):
            return conv
    return None


def coord_transform_forward(x, c, *, dim=3, inverse=True):
    """CoordTransform.forward (coord_transform=True, coord_transform_map=False,
    skip_bg=False).

    x: [B, K, P, dim] points, c: [B, K, c_dim] codes.
    Returns (x_transformed [B,K,P,dim], c_rest [B,K,c_dim-(2*dim+1)]).
    """
    B, K, P, D = x.shape
    assert D == dim and dim in (2, 3)
    max_scale, max_shift = (4.0, 5.0) if dim == 3 else (1.0, 0.5)
    tsize = 2 * dim + 1
    N = B * K
    lane_w = P * dim

    t = c[..., :tsize].reshape(N, tsize).astype(jnp.float32)
    tn, grid = _choose_tiling(N, lane_w, x.dtype.itemsize)
    n_pad = tn * grid

    conv = _roll_convention()
    if conv is not None:
        # Fast path: (N, P*dim) is a free reshape of x (no HBM transpose);
        # a point's coords sit in adjacent lanes and are mixed with lane rolls.
        shifts = (1, lane_w - 1) if conv else (lane_w - 1, 1)
        x_flat = x.reshape(N, lane_w)
        t_in = t
        if n_pad != N:
            x_flat = jnp.pad(x_flat, ((0, n_pad - N), (0, 0)))
            t_in = jnp.pad(t, ((0, n_pad - N), (0, 0)))
        out = _run_interleaved(x_flat, t_in, dim, max_scale, max_shift,
                               inverse, tn, grid, shifts)
        x_out = out[:N].reshape(B, K, P, D)
    else:
        # Fallback: coordinate-major planes (two wrapper transposes).
        x_planes = jnp.transpose(x.reshape(N, P, D), (2, 0, 1))   # (D, N, P)
        t_in = t
        if n_pad != N:
            x_planes = jnp.pad(x_planes, ((0, 0), (0, n_pad - N), (0, 0)))
            t_in = jnp.pad(t, ((0, n_pad - N), (0, 0)))
        out = _run_planes(x_planes, t_in, dim, max_scale, max_shift,
                          inverse, tn, grid)
        x_out = jnp.transpose(out, (1, 2, 0))[:N].reshape(B, K, P, D)

    return x_out, c[..., tsize:]


def _reference_forward(x, c, *, dim=3, inverse=True):
    """Pure-JAX reference reproducing the PyTorch semantics (dim==3)."""
    max_scale, max_shift = (4.0, 5.0) if dim == 3 else (1.0, 0.5)
    tsize = 2 * dim + 1
    t = c[..., :tsize]
    scale = jax.nn.sigmoid(t[..., :dim]) * (max_scale - MIN_SCALE) + MIN_SCALE
    shift = (jax.nn.sigmoid(t[..., dim:2 * dim]) - 0.5) * 2.0 * max_shift
    rot = t[..., 2 * dim] * 2.0 * math.pi
    cos, sin = jnp.cos(rot), jnp.sin(rot)
    z, o = jnp.zeros_like(cos), jnp.ones_like(cos)
    if inverse:
        R = jnp.stack([jnp.stack([cos, sin, z], -1),
                       jnp.stack([-sin, cos, z], -1),
                       jnp.stack([z, z, o], -1)], -2)
        xs = x - shift[..., None, :]
        y = jnp.einsum('...ji,...i->...j', R[..., None, :, :], xs)
        y = y / scale[..., None, :]
    else:
        R = jnp.stack([jnp.stack([cos, -sin, z], -1),
                       jnp.stack([sin, cos, z], -1),
                       jnp.stack([z, z, o], -1)], -2)
        xs = x * scale[..., None, :]
        y = jnp.einsum('...ji,...i->...j', R[..., None, :, :], xs)
        y = y + shift[..., None, :]
    return y, c[..., tsize:]


if __name__ == "__main__":
    B, K, P, DIM, C_DIM = 2, 4, 128, 3, 16
    key = jax.random.PRNGKey(0)
    kx, kc = jax.random.split(key)
    x = jax.random.normal(kx, (B, K, P, DIM), dtype=jnp.float32)
    c = jax.random.normal(kc, (B, K, C_DIM), dtype=jnp.float32)

    # inverse=True (module default)
    x_out, c_out = coord_transform_forward(x, c, dim=DIM, inverse=True)
    jax.block_until_ready(x_out)
    jax.block_until_ready(c_out)

    x_ref, c_ref = _reference_forward(x, c, dim=DIM, inverse=True)
    assert x_out.shape == (B, K, P, DIM)
    assert c_out.shape == (B, K, C_DIM - (2 * DIM + 1))
    assert jnp.allclose(x_out, x_ref, rtol=1e-4, atol=1e-3), (
        float(jnp.max(jnp.abs(x_out - x_ref))))
    assert jnp.allclose(c_out, c_ref)

    # forward direction (inverse=False)
    xf_out, _ = coord_transform_forward(x, c, dim=DIM, inverse=False)
    jax.block_until_ready(xf_out)
    xf_ref, _ = _reference_forward(x, c, dim=DIM, inverse=False)
    assert jnp.allclose(xf_out, xf_ref, rtol=1e-4, atol=1e-3), (
        float(jnp.max(jnp.abs(xf_out - xf_ref))))

    print("KERNEL_OK")
</pallas_src>

<mosaic_0001>
module attributes {stable_mosaic.version = 11 : i64} {
  func.func @_planes_kernel(%arg0: i32, %arg1: memref<3x8x128xf32, #tpu.memory_space<vmem>>, %arg2: memref<8x7xf32, #tpu.memory_space<vmem>>, %arg3: memref<3x8x128xf32, #tpu.memory_space<vmem>>) attributes {dimension_semantics = [#tpu.dimension_semantics<parallel>], iteration_bounds = array<i64: 1>, scalar_prefetch = 0 : i64, scratch_operands = 0 : i64, tpu.core_type = #tpu.core_type<tc>, window_params = [{transform_indices = @transform_0, window_bounds = array<i64: 3, 8, 128>}, {transform_indices = @transform_1, window_bounds = array<i64: 8, 7>}, {transform_indices = @transform_2, window_bounds = array<i64: 3, 8, 128>}]} {
    %c0 = arith.constant 0 : index
    %c0_0 = arith.constant 0 : index
    %0 = vector.load %arg2[%c0, %c0_0] : memref<8x7xf32, #tpu.memory_space<vmem>>, vector<8x7xf32>
    %1 = vector.extract_strided_slice %0 {offsets = [0, 0], sizes = [8, 6], strides = [1, 1]} : vector<8x7xf32> to vector<8x6xf32>
    %2 = arith.negf %1 : vector<8x6xf32>
    %3 = math.exp %2 : vector<8x6xf32>
    %cst = arith.constant 1.000000e+00 : f32
    %4 = vector.broadcast %cst : f32 to vector<8x6xf32>
    %5 = arith.addf %4, %3 : vector<8x6xf32>
    %6 = arith.divf %4, %5 : vector<8x6xf32>
    %7 = vector.extract_strided_slice %6 {offsets = [0, 0], sizes = [8, 3], strides = [1, 1]} : vector<8x6xf32> to vector<8x3xf32>
    %cst_1 = arith.constant 3.950000e+00 : f32
    %8 = vector.broadcast %cst_1 : f32 to vector<8x3xf32>
    %9 = arith.mulf %7, %8 : vector<8x3xf32>
    %cst_2 = arith.constant 5.000000e-02 : f32
    %10 = vector.broadcast %cst_2 : f32 to vector<8x3xf32>
    %11 = arith.addf %9, %10 : vector<8x3xf32>
    %12 = vector.extract_strided_slice %6 {offsets = [0, 3], sizes = [8, 3], strides = [1, 1]} : vector<8x6xf32> to vector<8x3xf32>
    %cst_3 = arith.constant 5.000000e-01 : f32
    %13 = vector.broadcast %cst_3 : f32 to vector<8x3xf32>
    %14 = arith.subf %12, %13 : vector<8x3xf32>
    %cst_4 = arith.constant 1.000000e+01 : f32
    %15 = vector.broadcast %cst_4 : f32 to vector<8x3xf32>
    %16 = arith.mulf %14, %15 : vector<8x3xf32>
    %17 = vector.extract_strided_slice %0 {offsets = [0, 6], sizes = [8, 1], strides = [1, 1]} : vector<8x7xf32> to vector<8x1xf32>
    %cst_5 = arith.constant 6.28318548 : f32
    %18 = vector.broadcast %cst_5 : f32 to vector<8x1xf32>
    %19 = arith.mulf %17, %18 : vector<8x1xf32>
    %20 = math.cos %19 : vector<8x1xf32>
    %21 = math.sin %19 : vector<8x1xf32>
    %22 = vector.extract_strided_slice %11 {offsets = [0, 0], sizes = [8, 1], strides = [1, 1]} : vector<8x3xf32> to vector<8x1xf32>
    %23 = vector.extract_strided_slice %11 {offsets = [0, 1], sizes = [8, 1], strides = [1, 1]} : vector<8x3xf32> to vector<8x1xf32>
    %24 = vector.extract_strided_slice %11 {offsets = [0, 2], sizes = [8, 1], strides = [1, 1]} : vector<8x3xf32> to vector<8x1xf32>
    %25 = vector.extract_strided_slice %16 {offsets = [0, 0], sizes = [8, 1], strides = [1, 1]} : vector<8x3xf32> to vector<8x1xf32>
    %26 = vector.extract_strided_slice %16 {offsets = [0, 1], sizes = [8, 1], strides = [1, 1]} : vector<8x3xf32> to vector<8x1xf32>
    %27 = vector.extract_strided_slice %16 {offsets = [0, 2], sizes = [8, 1], strides = [1, 1]} : vector<8x3xf32> to vector<8x1xf32>
    %cst_6 = arith.constant 1.000000e+00 : f32
    %28 = vector.broadcast %cst_6 : f32 to vector<8x1xf32>
    %29 = arith.divf %28, %22 : vector<8x1xf32>
    %cst_7 = arith.constant 1.000000e+00 : f32
    %30 = vector.broadcast %cst_7 : f32 to vector<8x1xf32>
    %31 = arith.divf %30, %23 : vector<8x1xf32>
    %cst_8 = arith.constant 1.000000e+00 : f32
    %32 = vector.broadcast %cst_8 : f32 to vector<8x1xf32>
    %33 = arith.divf %32, %24 : vector<8x1xf32>
    %34 = arith.mulf %20, %29 : vector<8x1xf32>
    %35 = arith.mulf %21, %29 : vector<8x1xf32>
    %cst_9 = arith.constant 0.000000e+00 : f32
    %36 = vector.broadcast %cst_9 : f32 to vector<8x1xf32>
    %37 = arith.subf %36, %21 : vector<8x1xf32>
    %38 = arith.mulf %37, %31 : vector<8x1xf32>
    %39 = arith.mulf %20, %31 : vector<8x1xf32>
    %40 = arith.mulf %34, %25 : vector<8x1xf32>
    %41 = arith.mulf %35, %26 : vector<8x1xf32>
    %42 = arith.addf %40, %41 : vector<8x1xf32>
    %cst_10 = arith.constant 0.000000e+00 : f32
    %43 = vector.broadcast %cst_10 : f32 to vector<8x1xf32>
    %44 = arith.subf %43, %42 : vector<8x1xf32>
    %45 = arith.mulf %38, %25 : vector<8x1xf32>
    %46 = arith.mulf %39, %26 : vector<8x1xf32>
    %47 = arith.addf %45, %46 : vector<8x1xf32>
    %cst_11 = arith.constant 0.000000e+00 : f32
    %48 = vector.broadcast %cst_11 : f32 to vector<8x1xf32>
    %49 = arith.subf %48, %47 : vector<8x1xf32>
    %cst_12 = arith.constant 0.000000e+00 : f32
    %50 = vector.broadcast %cst_12 : f32 to vector<8x1xf32>
    %51 = arith.subf %50, %33 : vector<8x1xf32>
    %52 = arith.mulf %51, %27 : vector<8x1xf32>
    %c0_13 = arith.constant 0 : index
    %c0_14 = arith.constant 0 : index
    %c0_15 = arith.constant 0 : index
    %53 = vector.load %arg1[%c0_13, %c0_14, %c0_15] : memref<3x8x128xf32, #tpu.memory_space<vmem>>, vector<1x8x128xf32>
    %54 = vector.shape_cast %53 : vector<1x8x128xf32> to vector<8x128xf32>
    %c1 = arith.constant 1 : index
    %c0_16 = arith.constant 0 : index
    %c0_17 = arith.constant 0 : index
    %55 = vector.load %arg1[%c1, %c0_16, %c0_17] : memref<3x8x128xf32, #tpu.memory_space<vmem>>, vector<1x8x128xf32>
    %56 = vector.shape_cast %55 : vector<1x8x128xf32> to vector<8x128xf32>
    %57 = vector.broadcast %34 : vector<8x1xf32> to vector<8x128xf32>
    %58 = arith.mulf %57, %54 : vector<8x128xf32>
    %59 = vector.broadcast %35 : vector<8x1xf32> to vector<8x128xf32>
    %60 = arith.mulf %59, %56 : vector<8x128xf32>
    %61 = arith.addf %58, %60 : vector<8x128xf32>
    %62 = vector.broadcast %44 : vector<8x1xf32> to vector<8x128xf32>
    %63 = arith.addf %61, %62 : vector<8x128xf32>
    %c0_18 = arith.constant 0 : index
    %c0_19 = arith.constant 0 : index
    %c0_20 = arith.constant 0 : index
    %64 = vector.load %arg3[%c0_18, %c0_19, %c0_20] : memref<3x8x128xf32, #tpu.memory_space<vmem>>, vector<1x8x128xf32>
    %65 = vector.shape_cast %64 : vector<1x8x128xf32> to vector<8x128xf32>
    %66 = vector.shape_cast %63 : vector<8x128xf32> to vector<1x8x128xf32>
    tpu.vector_store %arg3[%c0_18, %c0_19, %c0_20], %66 {strides = array<i32>} : memref<3x8x128xf32, #tpu.memory_space<vmem>>, vector<1x8x128xf32>,
    %67 = vector.broadcast %38 : vector<8x1xf32> to vector<8x128xf32>
    %68 = arith.mulf %67, %54 : vector<8x128xf32>
    %69 = vector.broadcast %39 : vector<8x1xf32> to vector<8x128xf32>
    %70 = arith.mulf %69, %56 : vector<8x128xf32>
    %71 = arith.addf %68, %70 : vector<8x128xf32>
    %72 = vector.broadcast %49 : vector<8x1xf32> to vector<8x128xf32>
    %73 = arith.addf %71, %72 : vector<8x128xf32>
    %c1_21 = arith.constant 1 : index
    %c0_22 = arith.constant 0 : index
    %c0_23 = arith.constant 0 : index
    %74 = vector.load %arg3[%c1_21, %c0_22, %c0_23] : memref<3x8x128xf32, #tpu.memory_space<vmem>>, vector<1x8x128xf32>
    %75 = vector.shape_cast %74 : vector<1x8x128xf32> to vector<8x128xf32>
    %76 = vector.shape_cast %73 : vector<8x128xf32> to vector<1x8x128xf32>
    tpu.vector_store %arg3[%c1_21, %c0_22, %c0_23], %76 {strides = array<i32>} : memref<3x8x128xf32, #tpu.memory_space<vmem>>, vector<1x8x128xf32>,
    %c2 = arith.constant 2 : index
    %c0_24 = arith.constant 0 : index
    %c0_25 = arith.constant 0 : index
    %77 = vector.load %arg1[%c2, %c0_24, %c0_25] : memref<3x8x128xf32, #tpu.memory_space<vmem>>, vector<1x8x128xf32>
    %78 = vector.shape_cast %77 : vector<1x8x128xf32> to vector<8x128xf32>
    %79 = vector.broadcast %33 : vector<8x1xf32> to vector<8x128xf32>
    %80 = arith.mulf %79, %78 : vector<8x128xf32>
    %81 = vector.broadcast %52 : vector<8x1xf32> to vector<8x128xf32>
    %82 = arith.addf %80, %81 : vector<8x128xf32>
    %c2_26 = arith.constant 2 : index
    %c0_27 = arith.constant 0 : index
    %c0_28 = arith.constant 0 : index
    %83 = vector.load %arg3[%c2_26, %c0_27, %c0_28] : memref<3x8x128xf32, #tpu.memory_space<vmem>>, vector<1x8x128xf32>
    %84 = vector.shape_cast %83 : vector<1x8x128xf32> to vector<8x128xf32>
    %85 = vector.shape_cast %82 : vector<8x128xf32> to vector<1x8x128xf32>
    tpu.vector_store %arg3[%c2_26, %c0_27, %c0_28], %85 {strides = array<i32>} : memref<3x8x128xf32, #tpu.memory_space<vmem>>, vector<1x8x128xf32>,
    return
  }
  func.func @transform_0(%arg0: i32) -> (i32, i32, i32) {
    %c0_i32 = arith.constant 0 : i32
    %c0_i32_0 = arith.constant 0 : i32
    %c0_i32_1 = arith.constant 0 : i32
    return %c0_i32, %arg0, %c0_i32_0 : i32, i32, i32
  }
  func.func @transform_1(%arg0: i32) -> (i32, i32) {
    %c0_i32 = arith.constant 0 : i32
    %c0_i32_0 = arith.constant 0 : i32
    return %arg0, %c0_i32 : i32, i32
  }
  func.func @transform_2(%arg0: i32) -> (i32, i32, i32) {
    %c0_i32 = arith.constant 0 : i32
    %c0_i32_0 = arith.constant 0 : i32
    %c0_i32_1 = arith.constant 0 : i32
    return %c0_i32, %arg0, %c0_i32_0 : i32, i32, i32
  }
}

</mosaic_0001>

<llo_original>
// kernel: tpu_custom_call.1
$region0: #{tpu_custom_call.1}
  #allocation0 [shape = 'u32[]', space=smem, size = 0x4, offset = 0x4, fixed_abs, tag = 'smem constant byte address 0x4 - core index']
  #allocation1 [shape = 'u32[72,128]{1,0:T(1,128)}', space=vmem, size = 0x9000, scoped, tag = 'internal scratch']
  %s0 = inlined_call_operand.hbm [shape: f32[3,8,128], index: 0, kind: input, shape index: {}]
  %s1 = inlined_call_operand.hbm [shape: f32[8,7], index: 1, kind: input, shape index: {}]
  %s2 = inlined_call_operand.hbm [shape: f32[3,8,128], index: 2, kind: output, shape index: {}]
  %s3 = sld [smem:[#allocation0]]
  $region26: #{tpu_custom_call.1} parent=0
    _
  %s5 = ssub.s32 1, %s3
  %s6 = scalar_select 0, %s5, %s3
  $region1: #{tpu_custom_call.1} parent=0
    #allocation2 [shape = 'u8[12288]{0}', space=vmem, size = 0x3000, scoped, tag = 'input window, operand 0, single buffered']
    #allocation3 [shape = 's32[1]{0}', space=sflag, size = 0x4, scoped, tag = 'scoped memory for tpu_custom_call.1']
    #allocation4 [shape = 's32[1]{0}', space=sflag, size = 0x4, scoped, tag = 'scoped memory for tpu_custom_call.1']
    #allocation5 [shape = 'u8[4096]{0}', space=vmem, size = 0x1000, scoped, tag = 'input window, operand 1, single buffered']
    #allocation6 [shape = 's32[1]{0}', space=sflag, size = 0x4, scoped, tag = 'scoped memory for tpu_custom_call.1']
    #allocation7 [shape = 'u8[12288]{0}', space=vmem, size = 0x3000, scoped, tag = 'output window, operand 0, single buffered']
    %7 = vsyncpa [#allocation3], 0
    %8 = vsyncpa [#allocation6], 0
    %9 = vsyncpa [#allocation4], 0
    // Predicated region
    $region2: #{tpu_custom_call.1} parent=1 // pred_check
      _
    $region3: #{tpu_custom_call.1} parent=1 // pred_check_branch
      %11 = sbr.rel (0) target = $region5
    $region4: #{tpu_custom_call.1} parent=1 // pred_region
      %13 = vsyncadd [#allocation3], 0
      %s14 = sshll.u32 %s0, 4
      %s15 = int_to_ptr.hbm [resolvable:$true] %s14
      %s16 = sshll.u32 [#allocation2], 4
      %s17 = int_to_ptr.vmem [resolvable:$true] %s16
      %22 = dma.hbm_to_vmem [thread:$0]  %s15, 384, %s17, [#allocation3], 128, 128, 8
    $region5: #{tpu_custom_call.1} parent=1 // pred_fallthru
      _
    // Predicated region
    $region6: #{tpu_custom_call.1} parent=1 // pred_check
      _
    $region7: #{tpu_custom_call.1} parent=1 // pred_check_branch
      %24 = sbr.rel (0) target = $region9
    $region8: #{tpu_custom_call.1} parent=1 // pred_region
      %26 = vsyncadd [#allocation6], 0
      %s28 = sshll.u32 %s1, 4
      %s29 = int_to_ptr.hbm [resolvable:$true] %s28
      %s30 = sshll.u32 [#allocation5], 4
      %s31 = int_to_ptr.vmem [resolvable:$true] %s30
      %33 = dma.hbm_to_vmem [thread:$0]  %s29, 128, %s31, [#allocation6]
    $region9: #{tpu_custom_call.1} parent=1 // pred_fallthru
      _
    // Predicated region
    $region10: #{tpu_custom_call.1} parent=1 // pred_check
      _
    $region11: #{tpu_custom_call.1} parent=1 // pred_check_branch
      %35 = sbr.rel (0) target = $region13
    $region12: #{tpu_custom_call.1} parent=1 // pred_region
      %37 = dma.done [#allocation3], 384
    $region13: #{tpu_custom_call.1} parent=1 // pred_fallthru
      _
    // Predicated region
    $region14: #{tpu_custom_call.1} parent=1 // pred_check
      _
    $region15: #{tpu_custom_call.1} parent=1 // pred_check_branch
      %39 = sbr.rel (0) target = $region17
    $region16: #{tpu_custom_call.1} parent=1 // pred_region
      %41 = dma.done [#allocation6], 128
    $region17: #{tpu_custom_call.1} parent=1 // pred_fallthru
      _
    %v42 = vld [vmem:[#allocation5] sm:$0xff]
    %v43 = vxor.u32 %v42, 2147483648
    %v44 = vmul.f32 %v43, 1.442695
    %v45 = vpow.pop %v44
    %v46 = vadd.f32 %v45, 1.0
    %v47 = vrcp.pop %v46
    %v48 = vmul.f32 %v46, %v47
    %v49 = vsub.f32 1.0, %v48
    %v50 = vmul.f32 %v47, %v49
    %v51 = vadd.f32 %v47, %v50
    %vm52 = vweird.f32 %v46
    %vm53 = vweird.f32 %v47
    %vm54 = vmor %vm52, %vm53
    %v55 = vsel %vm54, %v47, %v51
    %v56 = vand.u32 2147483647, %v46
    %vm57 = vcmp.eq.f32.partialorder %v56, 8.507059e+37
    %v58 = vand.u32 %v46, 2147483648
    %v59 = vor.u32 1.1754944e-38, %v58
    %v60 = vsel %vm57, %v59, %v55
    %v61 = vmul.f32 1.0, %v60
    %v62 = vmul.f32 %v61, 3.95
    %v63 = vadd.f32 %v62, 0.05
    %v64 = vsub.f32 %v61, 0.5
    %v65 = vmul.f32 %v64, 10.0
    %v66 = vmul.f32 %v42, 6.2831855
    %v67 = vand.u32 2147483647, %v66
    %vm68 = vcmp.le.f32.partialorder %v67, 0.7853982
    %vm69 = vcmp.lt.s32.totalorder %v66, 0
    %v70 = vand.u32 %v66, 2139095040
    %v71 = vshrl.u32 %v70, 23
    %v72 = vsub.s32 %v71, 127
    %v73 = vand.u32 2147483647, %v66
    %v74 = vand.u32 %v73, 8388607
    %v75 = vor.u32 %v74, 8388608
    %v76 = vsub.s32 0, %v75
    %v77 = vadd.s32 %v72, 1
    %vm78 = vcmp.gt.s32.totalorder %v77, 0
    %v79 = vsel %vm78, %v77, 0
    %v80 = vshrl.u32 %v79, 5
    %v81 = vand.u32 %v79, 31
    %v82 = vsub.s32 32, %v81
    %v83 = vshrl.u32 683565275, %v82
    %v84 = vshll.u32 683565275, %v81
    %v85 = vshrl.u32 2475754826, %v82
    %v86 = vor.u32 %v84, %v85
    %v87 = vshll.u32 2475754826, %v81
    %v88 = vshrl.u32 2131351028, %v82
    %v89 = vor.u32 %v87, %v88
    %v90 = vshll.u32 2131351028, %v81
    %v91 = vshrl.u32 2102212464, %v82
    %v92 = vor.u32 %v90, %v91
    %v93 = vshll.u32 2102212464, %v81
    %v94 = vshrl.u32 920167782, %v82
    %v95 = vor.u32 %v93, %v94
    %v96 = vshll.u32 920167782, %v81
    %v97 = vshrl.u32 1326507024, %v82
    %v98 = vor.u32 %v96, %v97
    %vm99 = vcmp.lt.s32.totalorder %v80, 1
    %vm100 = vcmp.lt.s32.totalorder %v80, 2
    %vm101 = vcmp.lt.s32.totalorder %v80, 3
    %vm102 = vcmp.lt.s32.totalorder %v80, 4
    %v103 = vsel %vm99, %v83, %v86
    %v104 = vsel %vm102, %v92, 2102212464
    %v105 = vsel %vm101, %v89, %v104
    %v106 = vsel %vm100, %v103, %v105
    %v107 = vsel %vm99, %v86, %v89
    %v108 = vsel %vm102, %v95, 920167782
    %v109 = vsel %vm101, %v92, %v108
    %v110 = vsel %vm100, %v107, %v109
    %v111 = vsel %vm99, %v89, %v92
    %v112 = vsel %vm102, %v98, 1326507024
    %v113 = vsel %vm101, %v95, %v112
    %v114 = vsel %vm100, %v111, %v113
    %v115 = vshll.u32 %v75, 8
    %v116 = vand.u32 %v115, 65535
    %v117 = vshrl.u32 %v115, 16
    %v118 = vand.u32 %v114, 65535
    %v119 = vshrl.u32 %v114, 16
    %v120 = vmul.u32 %v116, %v118
    %v121 = vmul.u32 %v116, %v119
    %v122 = vmul.u32 %v117, %v118
    %v123 = vmul.u32 %v117, %v119
    %v124 = vshll.u32 %v121, 16
    %v125 = vshrl.u32 %v121, 16
    %v126 = vshll.u32 %v122, 16
    %v127 = vshrl.u32 %v122, 16
    %vm128 = vc.u32 %v120, %v124
    %v129 = vsel %vm128, 1, 0
    %v130 = vadd.s32 %v120, %v124
    %v131 = vadd.s32 %v123, %v129
    %vm132 = vc.u32 %v130, %v126
    %v133 = vsel %vm132, 1, 0
    %v134 = vadd.s32 %v130, %v126
    %v135 = vadd.s32 %v131, %v133
    %v136 = vadd.s32 %v135, %v125
    %v137 = vadd.s32 %v136, %v127
    %v138 = vand.u32 %v115, 65535
    %v139 = vshrl.u32 %v115, 16
    %v140 = vand.u32 %v110, 65535
    %v141 = vshrl.u32 %v110, 16
    %v142 = vmul.u32 %v138, %v140
    %v143 = vmul.u32 %v138, %v141
    %v144 = vmul.u32 %v139, %v140
    %v145 = vmul.u32 %v139, %v141
    %v146 = vshll.u32 %v143, 16
    %v147 = vshrl.u32 %v143, 16
    %v148 = vshll.u32 %v144, 16
    %v149 = vshrl.u32 %v144, 16
    %vm150 = vc.u32 %v142, %v146
    %v151 = vsel %vm150, 1, 0
    %v152 = vadd.s32 %v142, %v146
    %v153 = vadd.s32 %v145, %v151
    %vm154 = vc.u32 %v152, %v148
    %v155 = vsel %vm154, 1, 0
    %v156 = vadd.s32 %v152, %v148
    %v157 = vadd.s32 %v153, %v155
    %v158 = vadd.s32 %v157, %v147
    %v159 = vadd.s32 %v158, %v149
    %v160 = vmul.u32 %v115, %v106
    %v161 = vadd.s32 %v137, %v156
    %vm162 = vc.u32 %v137, %v156
    %v163 = vadd.s32 %v159, 1
    %v164 = vsel %vm162, %v163, %v159
    %v165 = vadd.s32 %v160, %v164
    %v166 = vadd.s32 %v165, 536870912
    %v167 = vshrl.u32 %v166, 30
    %v168 = vshll.u32 %v167, 30
    %v169 = vsub.s32 %v165, %v168
    %vm170 = vcmp.lt.s32.totalorder %v169, 0
    %v171 = vsub.s32 0, %v169
    %v172 = vsel %vm170, %v171, %v169
    %v173 = vclz %v172
    %v174 = vsub.s32 %v173, 2
    %vm175 = vcmp.gt.s32.totalorder 0, %v174
    %v176 = vsel %vm175, 0, %v174
    %v177 = vsub.s32 32, %v176
    %v178 = vshll.u32 %v169, %v176
    %v179 = vshrl.u32 %v161, %v177
    %v180 = vor.u32 %v178, %v179
    %v181 = vsub.s32 4294967266, %v176
    %v182 = vadd.s32 %v181, 127
    %v183 = vshll.u32 %v182, 23
    %v184 = vor.u32 4788187, %v183
    %v185 = vand.u32 2147483647, %v184
    %v187 = vcvt.s32.f32 %v180
    %v188 = vmul.f32 %v187, %v185
    %v189 = vxor.u32 %v188, 2147483648
    %v190 = vsel %vm69, %v189, %v188
    %v191 = vsub.s32 4, %v167
    %v192 = vsel %vm69, %v191, %v167
    %v193 = vsel %vm68, %v66, %v190
    %v194 = vsel %vm68, 0, %v192
    %v195 = vmul.f32 %v193, %v193
    %v196 = vmul.f32 %v195, -0.001358992
    %v197 = vadd.f32 %v196, 0.041655596
    %v198 = vmul.f32 %v195, %v197
    %v199 = vadd.f32 %v198, -0.4999988
    %v200 = vmul.f32 %v195, %v199
    %v201 = vadd.f32 1.0, %v200
    %v202 = vmul.f32 %v193, %v193
    %v203 = vmul.f32 %v202, -0.00019511016
    %v204 = vadd.f32 %v203, 0.008332121
    %v205 = vmul.f32 %v202, %v204
    %v206 = vadd.f32 %v205, -0.16666654
    %v207 = vmul.f32 %v202, %v206
    %v208 = vadd.f32 %v207, 1.0
    %v209 = vmul.f32 %v208, %v193
    %vm210 = vweird.f32 %v66
    %v211 = vand.u32 %v194, 3
    %vm212 = vcmp.lt.s32.totalorder %v211, 2
    %vm213 = vcmp.eq.s32.totalorder %v211, 0
    %v214 = vxor.u32 %v209, 2147483648
    %v215 = vsel %vm213, %v201, %v214
    %vm216 = vcmp.eq.s32.totalorder %v211, 2
    %v217 = vxor.u32 %v201, 2147483648
    %v218 = vsel %vm216, %v217, %v209
    %v219 = vsel %vm212, %v215, %v218
    %v220 = vsel %vm210, nan, %v219
    %v221 = vand.u32 2147483647, %v66
    %vm222 = vcmp.le.f32.partialorder %v221, 0.7853982
    %vm223 = vcmp.lt.s32.totalorder %v66, 0
    %v224 = vand.u32 %v66, 2139095040
    %v225 = vshrl.u32 %v224, 23
    %v226 = vsub.s32 %v225, 127
    %v227 = vand.u32 2147483647, %v66
    %v228 = vand.u32 %v227, 8388607
    %v229 = vor.u32 %v228, 8388608
    %v230 = vsub.s32 0, %v229
    %v231 = vadd.s32 %v226, 1
    %vm232 = vcmp.gt.s32.totalorder %v231, 0
    %v233 = vsel %vm232, %v231, 0
    %v234 = vshrl.u32 %v233, 5
    %v235 = vand.u32 %v233, 31
    %v236 = vsub.s32 32, %v235
    %v237 = vshrl.u32 683565275, %v236
    %v238 = vshll.u32 683565275, %v235
    %v239 = vshrl.u32 2475754826, %v236
    %v240 = vor.u32 %v238, %v239
    %v241 = vshll.u32 2475754826, %v235
    %v242 = vshrl.u32 2131351028, %v236
    %v243 = vor.u32 %v241, %v242
    %v244 = vshll.u32 2131351028, %v235
    %v245 = vshrl.u32 2102212464, %v236
    %v246 = vor.u32 %v244, %v245
    %v247 = vshll.u32 2102212464, %v235
    %v248 = vshrl.u32 920167782, %v236
    %v249 = vor.u32 %v247, %v248
    %v250 = vshll.u32 920167782, %v235
    %v251 = vshrl.u32 1326507024, %v236
    %v252 = vor.u32 %v250, %v251
    %vm253 = vcmp.lt.s32.totalorder %v234, 1
    %vm254 = vcmp.lt.s32.totalorder %v234, 2
    %vm255 = vcmp.lt.s32.totalorder %v234, 3
    %vm256 = vcmp.lt.s32.totalorder %v234, 4
    %v257 = vsel %vm253, %v237, %v240
    %v258 = vsel %vm256, %v246, 2102212464
    %v259 = vsel %vm255, %v243, %v258
    %v260 = vsel %vm254, %v257, %v259
    %v261 = vsel %vm253, %v240, %v243
    %v262 = vsel %vm256, %v249, 920167782
    %v263 = vsel %vm255, %v246, %v262
    %v264 = vsel %vm254, %v261, %v263
    %v265 = vsel %vm253, %v243, %v246
    %v266 = vsel %vm256, %v252, 1326507024
    %v267 = vsel %vm255, %v249, %v266
    %v268 = vsel %vm254, %v265, %v267
    %v269 = vshll.u32 %v229, 8
    %v270 = vand.u32 %v269, 65535
    %v271 = vshrl.u32 %v269, 16
    %v272 = vand.u32 %v268, 65535
    %v273 = vshrl.u32 %v268, 16
    %v274 = vmul.u32 %v270, %v272
    %v275 = vmul.u32 %v270, %v273
    %v276 = vmul.u32 %v271, %v272
    %v277 = vmul.u32 %v271, %v273
    %v278 = vshll.u32 %v275, 16
    %v279 = vshrl.u32 %v275, 16
    %v280 = vshll.u32 %v276, 16
    %v281 = vshrl.u32 %v276, 16
    %vm282 = vc.u32 %v274, %v278
    %v283 = vsel %vm282, 1, 0
    %v284 = vadd.s32 %v274, %v278
    %v285 = vadd.s32 %v277, %v283
    %vm286 = vc.u32 %v284, %v280
    %v287 = vsel %vm286, 1, 0
    %v288 = vadd.s32 %v284, %v280
    %v289 = vadd.s32 %v285, %v287
    %v290 = vadd.s32 %v289, %v279
    %v291 = vadd.s32 %v290, %v281
    %v292 = vand.u32 %v269, 65535
    %v293 = vshrl.u32 %v269, 16
    %v294 = vand.u32 %v264, 65535
    %v295 = vshrl.u32 %v264, 16
    %v296 = vmul.u32 %v292, %v294
    %v297 = vmul.u32 %v292, %v295
    %v298 = vmul.u32 %v293, %v294
    %v299 = vmul.u32 %v293, %v295
    %v300 = vshll.u32 %v297, 16
    %v301 = vshrl.u32 %v297, 16
    %v302 = vshll.u32 %v298, 16
    %v303 = vshrl.u32 %v298, 16
    %vm304 = vc.u32 %v296, %v300
    %v305 = vsel %vm304, 1, 0
    %v306 = vadd.s32 %v296, %v300
    %v307 = vadd.s32 %v299, %v305
    %vm308 = vc.u32 %v306, %v302
    %v309 = vsel %vm308, 1, 0
    %v310 = vadd.s32 %v306, %v302
    %v311 = vadd.s32 %v307, %v309
    %v312 = vadd.s32 %v311, %v301
    %v313 = vadd.s32 %v312, %v303
    %v314 = vmul.u32 %v269, %v260
    %v315 = vadd.s32 %v291, %v310
    %vm316 = vc.u32 %v291, %v310
    %v317 = vadd.s32 %v313, 1
    %v318 = vsel %vm316, %v317, %v313
    %v319 = vadd.s32 %v314, %v318
    %v320 = vadd.s32 %v319, 536870912
    %v321 = vshrl.u32 %v320, 30
    %v322 = vshll.u32 %v321, 30
    %v323 = vsub.s32 %v319, %v322
    %vm324 = vcmp.lt.s32.totalorder %v323, 0
    %v325 = vsub.s32 0, %v323
    %v326 = vsel %vm324, %v325, %v323
    %v327 = vclz %v326
    %v328 = vsub.s32 %v327, 2
    %vm329 = vcmp.gt.s32.totalorder 0, %v328
    %v330 = vsel %vm329, 0, %v328
    %v331 = vsub.s32 32, %v330
    %v332 = vshll.u32 %v323, %v330
    %v333 = vshrl.u32 %v315, %v331
    %v334 = vor.u32 %v332, %v333
    %v335 = vsub.s32 4294967266, %v330
    %v336 = vadd.s32 %v335, 127
    %v337 = vshll.u32 %v336, 23
    %v338 = vor.u32 4788187, %v337
    %v339 = vand.u32 2147483647, %v338
    %v341 = vcvt.s32.f32 %v334
    %v342 = vmul.f32 %v341, %v339
    %v343 = vxor.u32 %v342, 2147483648
    %v344 = vsel %vm223, %v343, %v342
    %v345 = vsub.s32 4, %v321
    %v346 = vsel %vm223, %v345, %v321
    %v347 = vsel %vm222, %v66, %v344
    %v348 = vsel %vm222, 0, %v346
    %v349 = vmul.f32 %v347, %v347
    %v350 = vmul.f32 %v349, -0.001358992
    %v351 = vadd.f32 %v350, 0.041655596
    %v352 = vmul.f32 %v349, %v351
    %v353 = vadd.f32 %v352, -0.4999988
    %v354 = vmul.f32 %v349, %v353
    %v355 = vadd.f32 1.0, %v354
    %v356 = vmul.f32 %v347, %v347
    %v357 = vmul.f32 %v356, -0.00019511016
    %v358 = vadd.f32 %v357, 0.008332121
    %v359 = vmul.f32 %v356, %v358
    %v360 = vadd.f32 %v359, -0.16666654
    %v361 = vmul.f32 %v356, %v360
    %v362 = vadd.f32 %v361, 1.0
    %v363 = vmul.f32 %v362, %v347
    %vm364 = vweird.f32 %v66
    %v365 = vadd.s32 %v348, 3
    %v366 = vand.u32 %v365, 3
    %vm367 = vcmp.lt.s32.totalorder %v366, 2
    %vm368 = vcmp.eq.s32.totalorder %v366, 0
    %v369 = vxor.u32 %v363, 2147483648
    %v370 = vsel %vm368, %v355, %v369
    %vm371 = vcmp.eq.s32.totalorder %v366, 2
    %v372 = vxor.u32 %v355, 2147483648
    %v373 = vsel %vm371, %v372, %v363
    %v374 = vsel %vm367, %v370, %v373
    %v375 = vsel %vm364, nan, %v374
    %v376 = vrcp.pop %v63
    %v377 = vmul.f32 %v63, %v376
    %v378 = vsub.f32 1.0, %v377
    %v379 = vmul.f32 %v376, %v378
    %v380 = vadd.f32 %v376, %v379
    %vm381 = vweird.f32 %v63
    %vm382 = vweird.f32 %v376
    %vm383 = vmor %vm381, %vm382
    %v384 = vsel %vm383, %v376, %v380
    %v385 = vand.u32 2147483647, %v63
    %vm386 = vcmp.eq.f32.partialorder %v385, 8.507059e+37
    %v387 = vand.u32 %v63, 2147483648
    %v388 = vor.u32 1.1754944e-38, %v387
    %v389 = vsel %vm386, %v388, %v384
    %v390 = vmul.f32 1.0, %v389
    %392 = vrot.lane.b32.xlu0 %v390, 6
    %v393 = vpop.permute.xlu0 %392
    %v395 = vmul.f32 %v220, %v393
    %v396 = vmul.f32 %v375, %v393
    %v397 = vsub.f32 0.0, %v375
    %398 = vrot.lane.b32.xlu0 %v390, 5
    %v399 = vpop.permute.xlu0 %398
    %v401 = vmul.f32 %v397, %v399
    %v402 = vmul.f32 %v220, %v399
    %404 = vrot.lane.b32.xlu0 %v65, 3
    %v405 = vpop.permute.xlu0 %404
    %v407 = vmul.f32 %v395, %v405
    %408 = vrot.lane.b32.xlu0 %v65, 2
    %v409 = vpop.permute.xlu0 %408
    %v411 = vmul.f32 %v396, %v409
    %v412 = vadd.f32 %v407, %v411
    %v413 = vsub.f32 0.0, %v412
    %v414 = vmul.f32 %v401, %v405
    %v415 = vmul.f32 %v402, %v409
    %v416 = vadd.f32 %v414, %v415
    %v417 = vsub.f32 0.0, %v416
    %v418 = vsub.f32 0.0, %v390
    %419 = vrot.lane.b32.xlu0 %v65, 125
    %v420 = vpop.permute.xlu0 %419
    %v422 = vmul.f32 %v418, %v420
    %v423 = vld [vmem:[#allocation2] sm:$0xff]
    %s424 = scalar_lea.vmem [#allocation2], 8
    %v425 = vld [vmem:[%s424] sm:$0xff]
    %427 = vset.pattern.permute.xlu0 6
    %428 = vperm.xlu0 %427, %v395
    %v429 = vpop.permute.xlu0 %428
    %v431 = vmul.f32 %v429, %v423
    %433 = vset.pattern.permute.xlu0 6
    %434 = vperm.xlu0 %433, %v396
    %v435 = vpop.permute.xlu0 %434
    %v437 = vmul.f32 %v435, %v425
    %v438 = vadd.f32 %v431, %v437
    %440 = vset.pattern.permute.xlu0 6
    %441 = vperm.xlu0 %440, %v413
    %v442 = vpop.permute.xlu0 %441
    %v444 = vadd.f32 %v438, %v442
    %445 = vst [vmem:[#allocation7] sm:$0xff] %v444
    %447 = vset.pattern.permute.xlu0 6
    %448 = vperm.xlu0 %447, %v401
    %v449 = vpop.permute.xlu0 %448
    %v451 = vmul.f32 %v449, %v423
    %453 = vset.pattern.permute.xlu0 6
    %454 = vperm.xlu0 %453, %v402
    %v455 = vpop.permute.xlu0 %454
    %v457 = vmul.f32 %v455, %v425
    %v458 = vadd.f32 %v451, %v457
    %460 = vset.pattern.permute.xlu0 6
    %461 = vperm.xlu0 %460, %v417
    %v462 = vpop.permute.xlu0 %461
    %v464 = vadd.f32 %v458, %v462
    %s465 = scalar_lea.vmem [#allocation7], 8
    %466 = vst [vmem:[%s465] sm:$0xff] %v464
    %s467 = scalar_lea.vmem [#allocation2], 16
    %v468 = vld [vmem:[%s467] sm:$0xff]
    %469 = vset.pattern.permute.xlu0 2
    %470 = vperm.xlu0 %469, %v390
    %v471 = vpop.permute.xlu0 %470
    %v473 = vmul.f32 %v471, %v468
    %475 = vset.pattern.permute.xlu0 2
    %476 = vperm.xlu0 %475, %v422
    %v477 = vpop.permute.xlu0 %476
    %v479 = vadd.f32 %v473, %v477
    %s480 = scalar_lea.vmem [#allocation7], 16
    %481 = vst [vmem:[%s480] sm:$0xff] %v479
    // Predicated region
    $region18: #{tpu_custom_call.1} parent=1 // pred_check
      _
    $region19: #{tpu_custom_call.1} parent=1 // pred_check_branch
      %483 = sbr.rel (0) target = $region21
    $region20: #{tpu_custom_call.1} parent=1 // pred_region
      %485 = vsyncadd [#allocation4], 0
      %s486 = sshll.u32 [#allocation7], 4
      %s487 = int_to_ptr.vmem [resolvable:$true] %s486
      %s488 = sshll.u32 %s2, 4
      %s489 = int_to_ptr.hbm [resolvable:$true] %s488
      %494 = dma.vmem_to_hbm [thread:$0]  %s487, 384, %s489, [#allocation4], 128, 128, 8
    $region21: #{tpu_custom_call.1} parent=1 // pred_fallthru
      _
    // Predicated region
    $region22: #{tpu_custom_call.1} parent=1 // pred_check
      _
    $region23: #{tpu_custom_call.1} parent=1 // pred_check_branch
      %496 = sbr.rel (0) target = $region25
    $region24: #{tpu_custom_call.1} parent=1 // pred_region
      %498 = dma.done [#allocation4], 384
    $region25: #{tpu_custom_call.1} parent=1 // pred_fallthru
      _
    %499 = vsyncpa [#allocation3], 1
    %500 = vsyncpa [#allocation6], 1
    %501 = vsyncpa [#allocation4], 1

</llo_original>
